<compile_context>
chip_gen: v7x
topology: tpu7x:2x2x1
jax: 0.10.0
libtpu: 0.0.40
codegen_flags: <defaults>
</compile_context>

<pallas_src>
import jax
import jax.numpy as jnp
from jax.experimental import pallas as pl
from jax.experimental.pallas import tpu as pltpu

ALPHA = 0.25
GAMMA = 2           # implemented as an explicit square below
LANE = 128          # lane width of a vreg
MAX_ROWS = 4096     # 4096 * 128 * 4 B = 2 MiB per input block per grid step


def _weighted_focal_kernel(x_ref, y_ref, out_ref):
    x = x_ref[...]                       # (R, 128) f32 logits
    y = y_ref[...]                       # (R, 128) f32 targets in {0,1}; -1 marks padding
    valid = y >= 0.0
    yv = jnp.where(valid, y, 0.0)

    # Numerically stable BCE-with-logits: max(x,0) - x*y + log1p(exp(-|x|)).
    ax = jnp.abs(x)
    e = jnp.exp(-ax)                     # EUP (only exp in the kernel)
    log1pe = jnp.log1p(e)                # EUP
    bce = jnp.maximum(x, 0.0) - x * yv + log1pe

    # pt = exp(-bce) is exactly the probability of the true class; recover it
    # from e instead of paying a second exp:
    #   sigmoid(|x|) = 1/(1+e),  sigmoid(-|x|) = e/(1+e)
    s = 1.0 / (1.0 + e)
    pt = jnp.where((yv >= 0.5) == (x >= 0.0), s, e * s)

    # at = alpha for y==0, (1-alpha) for y==1.
    at = ALPHA + (1.0 - 2.0 * ALPHA) * yv

    omp = 1.0 - pt                        # explicit square: gamma == 2
    focal = at * (omp * omp) * bce
    focal = jnp.where(valid, focal, 0.0)

    # Per-tile, per-lane partial sum (sublane reduce only). The cross-lane
    # reduce + mean happen once in the wrapper.
    out_ref[...] = jnp.sum(focal, axis=0).reshape(1, 1, LANE)


def weighted_focal_loss(inputs, targets, alpha=0.25, gamma=2):
    """Equivalent of WeightedFocalLoss(alpha=0.25, gamma=2).forward(inputs, targets)."""
    assert alpha == ALPHA and gamma == GAMMA

    # Elementwise op: flatten (free, row-major) into a lane-dense 2D slab.
    x = inputs.reshape(-1).astype(jnp.float32)
    y = targets.reshape(-1).astype(jnp.float32)
    n = x.shape[0]

    # Rows per grid step: multiple of 8 (sublane), capped so the per-step
    # block stays ~2 MiB per input.
    rows_needed = pl.cdiv(n, LANE)
    rows = min(MAX_ROWS, max(8, ((rows_needed + 7) // 8) * 8))
    block_elems = rows * LANE

    pad = (-n) % block_elems
    if pad:
        x = jnp.pad(x, (0, pad))
        y = jnp.pad(y, (0, pad), constant_values=-1.0)   # sentinel => masked out
    n_rows = (n + pad) // LANE
    x2 = x.reshape(n_rows, LANE)
    y2 = y.reshape(n_rows, LANE)
    n_tiles = n_rows // rows

    partials = pl.pallas_call(
        _weighted_focal_kernel,
        out_shape=jax.ShapeDtypeStruct((n_tiles, 1, LANE), jnp.float32),
        grid_spec=pltpu.PrefetchScalarGridSpec(
            num_scalar_prefetch=0,
            grid=(n_tiles,),
            in_specs=[
                pl.BlockSpec((rows, LANE), lambda i: (i, 0)),
                pl.BlockSpec((rows, LANE), lambda i: (i, 0)),
            ],
            # Each step owns its own output block -> no carried state, so the
            # grid axis can be "parallel" (shards across v7x's 2 TensorCores).
            out_specs=pl.BlockSpec((1, 1, LANE), lambda i: (i, 0, 0)),
        ),
        compiler_params=pltpu.CompilerParams(
            dimension_semantics=("parallel",),
        ),
    )(x2, y2)

    # Final cross-lane / cross-tile reduce + mean (divide by true element count).
    return jnp.sum(partials) / jnp.float32(n)


def _weighted_focal_loss_ref(inputs, targets, alpha=0.25, gamma=2):
    # Pure-JAX mirror of the PyTorch forward (stable BCE-with-logits formula,
    # alpha gather on the long-cast targets, pt = exp(-bce), mean reduction).
    x = inputs.reshape(-1).astype(jnp.float32)
    y = targets.reshape(-1).astype(jnp.float32)
    bce = jnp.maximum(x, 0.0) - x * y + jnp.log1p(jnp.exp(-jnp.abs(x)))
    at = jnp.where(y.astype(jnp.int32) == 0, alpha, 1.0 - alpha)
    pt = jnp.exp(-bce)
    return jnp.mean(at * (1.0 - pt) ** gamma * bce)


if __name__ == "__main__":
    key = jax.random.PRNGKey(0)
    k1, k2 = jax.random.split(key)

    shape = (2, 4, 16, 16)
    logits = jax.random.normal(k1, shape, dtype=jnp.float32)
    targets = jax.random.randint(k2, shape, 0, 2, dtype=jnp.int32).astype(jnp.float32)

    out = weighted_focal_loss(logits, targets)
    out = jax.block_until_ready(out)

    ref = jax.block_until_ready(_weighted_focal_loss_ref(logits, targets))
    assert jnp.allclose(out, ref, rtol=1e-5, atol=1e-6), (out, ref)

    print("KERNEL_OK")
</pallas_src>

<mosaic_0001>
module attributes {stable_mosaic.version = 11 : i64} {
  func.func @_weighted_focal_kernel(%arg0: i32, %arg1: memref<16x128xf32, #tpu.memory_space<vmem>>, %arg2: memref<16x128xf32, #tpu.memory_space<vmem>>, %arg3: memref<1x1x128xf32, #tpu.memory_space<vmem>>) attributes {dimension_semantics = [#tpu.dimension_semantics<parallel>], iteration_bounds = array<i64: 1>, scalar_prefetch = 0 : i64, scratch_operands = 0 : i64, tpu.core_type = #tpu.core_type<tc>, window_params = [{transform_indices = @transform_0, window_bounds = array<i64: 16, 128>}, {transform_indices = @transform_1, window_bounds = array<i64: 16, 128>}, {transform_indices = @transform_2, window_bounds = array<i64: 1, 1, 128>}]} {
    %c0 = arith.constant 0 : index
    %c0_0 = arith.constant 0 : index
    %0 = vector.load %arg1[%c0, %c0_0] : memref<16x128xf32, #tpu.memory_space<vmem>>, vector<16x128xf32>
    %c0_1 = arith.constant 0 : index
    %c0_2 = arith.constant 0 : index
    %1 = vector.load %arg2[%c0_1, %c0_2] : memref<16x128xf32, #tpu.memory_space<vmem>>, vector<16x128xf32>
    %cst = arith.constant 0.000000e+00 : f32
    %2 = vector.broadcast %cst : f32 to vector<16x128xf32>
    %3 = arith.cmpf oge, %1, %2 : vector<16x128xf32>
    %cst_3 = arith.constant 0.000000e+00 : f32
    %4 = vector.broadcast %cst_3 : f32 to vector<16x128xf32>
    %5 = arith.select %3, %1, %4 : vector<16x128xi1>, vector<16x128xf32>
    %6 = math.absf %0 : vector<16x128xf32>
    %cst_4 = arith.constant 0.000000e+00 : f32
    %7 = vector.broadcast %cst_4 : f32 to vector<16x128xf32>
    %8 = arith.subf %7, %6 : vector<16x128xf32>
    %9 = math.exp %8 : vector<16x128xf32>
    %10 = math.log1p %9 : vector<16x128xf32>
    %cst_5 = arith.constant 0.000000e+00 : f32
    %11 = vector.broadcast %cst_5 : f32 to vector<16x128xf32>
    %12 = arith.maximumf %0, %11 : vector<16x128xf32>
    %13 = arith.mulf %0, %5 : vector<16x128xf32>
    %14 = arith.subf %12, %13 : vector<16x128xf32>
    %15 = arith.addf %14, %10 : vector<16x128xf32>
    %cst_6 = arith.constant 1.000000e+00 : f32
    %16 = vector.broadcast %cst_6 : f32 to vector<16x128xf32>
    %17 = arith.addf %16, %9 : vector<16x128xf32>
    %cst_7 = arith.constant 1.000000e+00 : f32
    %18 = vector.broadcast %cst_7 : f32 to vector<16x128xf32>
    %19 = arith.divf %18, %17 : vector<16x128xf32>
    %cst_8 = arith.constant 5.000000e-01 : f32
    %20 = vector.broadcast %cst_8 : f32 to vector<16x128xf32>
    %21 = arith.cmpf oge, %5, %20 : vector<16x128xf32>
    %cst_9 = arith.constant 0.000000e+00 : f32
    %22 = vector.broadcast %cst_9 : f32 to vector<16x128xf32>
    %23 = arith.cmpf oge, %0, %22 : vector<16x128xf32>
    %24 = arith.xori %21, %23 : vector<16x128xi1>
    %cst_10 = arith.constant dense<true> : vector<16x128xi1>
    %25 = arith.xori %24, %cst_10 : vector<16x128xi1>
    %26 = arith.mulf %9, %19 : vector<16x128xf32>
    %27 = arith.select %25, %19, %26 : vector<16x128xi1>, vector<16x128xf32>
    %cst_11 = arith.constant 5.000000e-01 : f32
    %28 = vector.broadcast %cst_11 : f32 to vector<16x128xf32>
    %29 = arith.mulf %28, %5 : vector<16x128xf32>
    %cst_12 = arith.constant 2.500000e-01 : f32
    %30 = vector.broadcast %cst_12 : f32 to vector<16x128xf32>
    %31 = arith.addf %30, %29 : vector<16x128xf32>
    %cst_13 = arith.constant 1.000000e+00 : f32
    %32 = vector.broadcast %cst_13 : f32 to vector<16x128xf32>
    %33 = arith.subf %32, %27 : vector<16x128xf32>
    %34 = arith.mulf %33, %33 : vector<16x128xf32>
    %35 = arith.mulf %31, %34 : vector<16x128xf32>
    %36 = arith.mulf %35, %15 : vector<16x128xf32>
    %cst_14 = arith.constant 0.000000e+00 : f32
    %37 = vector.broadcast %cst_14 : f32 to vector<16x128xf32>
    %38 = arith.select %3, %36, %37 : vector<16x128xi1>, vector<16x128xf32>
    %cst_15 = arith.constant dense<0.000000e+00> : vector<128xf32>
    %39 = vector.multi_reduction <add>, %38, %cst_15 [0] : vector<16x128xf32> to vector<128xf32>
    %40 = vector.shape_cast %39 : vector<128xf32> to vector<1x1x128xf32>
    %c0_16 = arith.constant 0 : index
    %c0_17 = arith.constant 0 : index
    %c0_18 = arith.constant 0 : index
    %41 = vector.load %arg3[%c0_16, %c0_17, %c0_18] : memref<1x1x128xf32, #tpu.memory_space<vmem>>, vector<1x1x128xf32>
    tpu.vector_store %arg3[%c0_16, %c0_17, %c0_18], %40 {strides = array<i32>} : memref<1x1x128xf32, #tpu.memory_space<vmem>>, vector<1x1x128xf32>,
    return
  }
  func.func @transform_0(%arg0: i32) -> (i32, i32) {
    %c0_i32 = arith.constant 0 : i32
    %c0_i32_0 = arith.constant 0 : i32
    return %arg0, %c0_i32 : i32, i32
  }
  func.func @transform_1(%arg0: i32) -> (i32, i32) {
    %c0_i32 = arith.constant 0 : i32
    %c0_i32_0 = arith.constant 0 : i32
    return %arg0, %c0_i32 : i32, i32
  }
  func.func @transform_2(%arg0: i32) -> (i32, i32, i32) {
    %c0_i32 = arith.constant 0 : i32
    %c0_i32_0 = arith.constant 0 : i32
    %c0_i32_1 = arith.constant 0 : i32
    return %arg0, %c0_i32, %c0_i32_0 : i32, i32, i32
  }
}

</mosaic_0001>

<llo_original>
// kernel: tpu_custom_call.1
$region0: #{tpu_custom_call.1}
  #allocation0 [shape = 'u32[]', space=smem, size = 0x4, offset = 0x4, fixed_abs, tag = 'smem constant byte address 0x4 - core index']
  #allocation1 [shape = 'u32[144,128]{1,0:T(1,128)}', space=vmem, size = 0x12000, scoped, tag = 'internal scratch']
  %s0 = inlined_call_operand.hbm [shape: f32[16,128], index: 0, kind: input, shape index: {}]
  %s1 = inlined_call_operand.hbm [shape: f32[16,128], index: 1, kind: input, shape index: {}]
  %s2 = inlined_call_operand.hbm [shape: f32[1,1,128], index: 2, kind: output, shape index: {}]
  %s3 = sld [smem:[#allocation0]]
  $region26: #{tpu_custom_call.1} parent=0
    _
  %s5 = ssub.s32 1, %s3
  %s6 = scalar_select 0, %s5, %s3
  $region1: #{tpu_custom_call.1} parent=0
    #allocation2 [shape = 'u8[8192]{0}', space=vmem, size = 0x2000, scoped, tag = 'input window, operand 0, single buffered']
    #allocation3 [shape = 's32[1]{0}', space=sflag, size = 0x4, scoped, tag = 'scoped memory for tpu_custom_call.1']
    #allocation4 [shape = 's32[1]{0}', space=sflag, size = 0x4, scoped, tag = 'scoped memory for tpu_custom_call.1']
    #allocation5 [shape = 'u8[8192]{0}', space=vmem, size = 0x2000, scoped, tag = 'input window, operand 1, single buffered']
    #allocation6 [shape = 's32[1]{0}', space=sflag, size = 0x4, scoped, tag = 'scoped memory for tpu_custom_call.1']
    #allocation7 [shape = 'u8[512]{0}', space=vmem, size = 0x400, scoped, tag = 'output window, operand 0, single buffered']
    %7 = vsyncpa [#allocation3], 0
    %8 = vsyncpa [#allocation6], 0
    %9 = vsyncpa [#allocation4], 0
    // Predicated region
    $region2: #{tpu_custom_call.1} parent=1 // pred_check
      _
    $region3: #{tpu_custom_call.1} parent=1 // pred_check_branch
      %11 = sbr.rel (0) target = $region5
    $region4: #{tpu_custom_call.1} parent=1 // pred_region
      %s13 = ssub.s32 256, 256
      %14 = vsyncadd [#allocation3], %s13
      %s15 = sshll.u32 [#allocation2], 4
      %s16 = int_to_ptr.vmem [resolvable:$true] %s15
      %21 = dma.hbm_to_vmem [thread:$0]  %s0, 256, %s16, [#allocation3], 128, 128, 8
    $region5: #{tpu_custom_call.1} parent=1 // pred_fallthru
      _
    // Predicated region
    $region6: #{tpu_custom_call.1} parent=1 // pred_check
      _
    $region7: #{tpu_custom_call.1} parent=1 // pred_check_branch
      %23 = sbr.rel (0) target = $region9
    $region8: #{tpu_custom_call.1} parent=1 // pred_region
      %s25 = ssub.s32 256, 256
      %26 = vsyncadd [#allocation6], %s25
      %s27 = sshll.u32 [#allocation5], 4
      %s28 = int_to_ptr.vmem [resolvable:$true] %s27
      %33 = dma.hbm_to_vmem [thread:$0]  %s1, 256, %s28, [#allocation6], 128, 128, 8
    $region9: #{tpu_custom_call.1} parent=1 // pred_fallthru
      _
    // Predicated region
    $region10: #{tpu_custom_call.1} parent=1 // pred_check
      _
    $region11: #{tpu_custom_call.1} parent=1 // pred_check_branch
      %35 = sbr.rel (0) target = $region13
    $region12: #{tpu_custom_call.1} parent=1 // pred_region
      %36 = dma.done [#allocation3], 256
    $region13: #{tpu_custom_call.1} parent=1 // pred_fallthru
      _
    // Predicated region
    $region14: #{tpu_custom_call.1} parent=1 // pred_check
      _
    $region15: #{tpu_custom_call.1} parent=1 // pred_check_branch
      %38 = sbr.rel (0) target = $region17
    $region16: #{tpu_custom_call.1} parent=1 // pred_region
      %39 = dma.done [#allocation6], 256
    $region17: #{tpu_custom_call.1} parent=1 // pred_fallthru
      _
    %v40 = vld [vmem:[#allocation2] sm:$0xff]
    %v41 = vld [vmem:[#allocation2 + $0x8] sm:$0xff]
    %v42 = vld [vmem:[#allocation5] sm:$0xff]
    %v43 = vld [vmem:[#allocation5 + $0x8] sm:$0xff]
    %vm44 = vcmp.ge.f32.partialorder %v42, 0.0
    %vm45 = vcmp.ge.f32.partialorder %v43, 0.0
    %v46 = vsel %vm44, %v42, 0.0
    %v47 = vsel %vm45, %v43, 0.0
    %v48 = vand.u32 2147483647, %v40
    %v49 = vand.u32 2147483647, %v41
    %v50 = vsub.f32 0.0, %v48
    %v51 = vsub.f32 0.0, %v49
    %v52 = vmul.f32 %v50, 1.442695
    %v53 = vpow.pop %v52
    %v54 = vmul.f32 %v51, 1.442695
    %v55 = vpow.pop %v54
    %v56 = vadd.f32 %v53, 1.0
    %v57 = vlog2.pop %v56
    %v58 = vmul.f32 %v57, 0.6931472
    %v59 = vmul.f32 -0.5, %v53
    %v60 = vadd.f32 %v59, 1.0
    %v61 = vmul.f32 %v60, %v53
    %v62 = vand.u32 2147483647, %v53
    %vm63 = vcmp.lt.f32.partialorder %v62, 0.0004427343
    %v64 = vsel %vm63, %v61, %v58
    %v65 = vadd.f32 %v55, 1.0
    %v66 = vlog2.pop %v65
    %v67 = vmul.f32 %v66, 0.6931472
    %v68 = vmul.f32 -0.5, %v55
    %v69 = vadd.f32 %v68, 1.0
    %v70 = vmul.f32 %v69, %v55
    %v71 = vand.u32 2147483647, %v55
    %vm72 = vcmp.lt.f32.partialorder %v71, 0.0004427343
    %v73 = vsel %vm72, %v70, %v67
    %v74 = vmax.f32 %v40, 0.0
    %v75 = vmax.f32 %v41, 0.0
    %v76 = vmul.f32 %v40, %v46
    %v77 = vmul.f32 %v41, %v47
    %v78 = vsub.f32 %v74, %v76
    %v79 = vsub.f32 %v75, %v77
    %v80 = vadd.f32 %v78, %v64
    %v81 = vadd.f32 %v79, %v73
    %v82 = vadd.f32 %v53, 1.0
    %v83 = vadd.f32 %v55, 1.0
    %v84 = vrcp.pop %v82
    %v85 = vmul.f32 1.0, %v84
    %v86 = vrcp.pop %v83
    %v87 = vmul.f32 1.0, %v86
    %vm88 = vcmp.ge.f32.partialorder %v46, 0.5
    %vm89 = vcmp.ge.f32.partialorder %v47, 0.5
    %vm90 = vcmp.ge.f32.partialorder %v40, 0.0
    %vm91 = vcmp.ge.f32.partialorder %v41, 0.0
    %vm92 = vmxor %vm88, %vm90
    %vm93 = vmxor %vm89, %vm91
    %vm94 = vmxor %vm92, 1
    %vm95 = vmxor %vm93, 1
    %v96 = vmul.f32 %v53, %v85
    %v97 = vmul.f32 %v55, %v87
    %v98 = vsel %vm94, %v85, %v96
    %v99 = vsel %vm95, %v87, %v97
    %v100 = vmul.f32 %v46, 0.5
    %v101 = vmul.f32 %v47, 0.5
    %v102 = vadd.f32 %v100, 0.25
    %v103 = vadd.f32 %v101, 0.25
    %v104 = vsub.f32 1.0, %v98
    %v105 = vsub.f32 1.0, %v99
    %v106 = vmul.f32 %v104, %v104
    %v107 = vmul.f32 %v105, %v105
    %v108 = vmul.f32 %v102, %v106
    %v109 = vmul.f32 %v103, %v107
    %v110 = vmul.f32 %v108, %v80
    %v111 = vmul.f32 %v109, %v81
    %v112 = vsel %vm44, %v110, 0.0
    %v113 = vsel %vm45, %v111, 0.0
    %v114 = vadd.f32 %v112, %v113
    %v115 = vrot.slane %v114, 4
    %v116 = vadd.f32 %v114, %v115
    %v117 = vrot.slane %v116, 2
    %v118 = vadd.f32 %v116, %v117
    %v119 = vrot.slane %v118, 1
    %v120 = vadd.f32 %v118, %v119
    %121 = vst [vmem:[#allocation7] sm:$0x1] %v120
    // Predicated region
    $region18: #{tpu_custom_call.1} parent=1 // pred_check
      _
    $region19: #{tpu_custom_call.1} parent=1 // pred_check_branch
      %123 = sbr.rel (0) target = $region21
    $region20: #{tpu_custom_call.1} parent=1 // pred_region
      %s125 = ssub.s32 16, 16
      %126 = vsyncadd [#allocation4], %s125
      %s128 = sshll.u32 [#allocation7], 4
      %s129 = int_to_ptr.vmem [resolvable:$true] %s128
      %131 = dma.vmem_to_hbm [thread:$0]  %s129, 16, %s2, [#allocation4]
    $region21: #{tpu_custom_call.1} parent=1 // pred_fallthru
      _
    // Predicated region
    $region22: #{tpu_custom_call.1} parent=1 // pred_check
      _
    $region23: #{tpu_custom_call.1} parent=1 // pred_check_branch
      %133 = sbr.rel (0) target = $region25
    $region24: #{tpu_custom_call.1} parent=1 // pred_region
      %134 = dma.done [#allocation4], 16
    $region25: #{tpu_custom_call.1} parent=1 // pred_fallthru
      _
    %135 = vsyncpa [#allocation3], 1
    %136 = vsyncpa [#allocation6], 1
    %137 = vsyncpa [#allocation4], 1

</llo_original>
